<compile_context>
chip_gen: v7x
topology: tpu7x:2x2x1
jax: 0.10.0
libtpu: 0.0.40
codegen_flags: <defaults>
</compile_context>

<pallas_src>
import jax
import jax.numpy as jnp
from jax.experimental import pallas as pl
from jax.experimental.pallas import tpu as pltpu


def _silu_kernel(x_ref, o_ref):
    xf = x_ref[...].astype(jnp.float32)
    e = jnp.exp(-xf)                              # EUP slot
    sig = pl.reciprocal(1.0 + e, approx=False)    # exact 1 / (1 + e)
    o_ref[...] = (xf * sig).astype(o_ref.dtype)


def _silu_jnp(x):
    xf = x.astype(jnp.float32)
    return (xf * (1.0 / (1.0 + jnp.exp(-xf)))).astype(x.dtype)


_LANE_CANDIDATES = (1024, 512, 256, 128)
_DEFAULT_TILE_BYTES = 4 << 20     # elementwise HBM-roofline plateau; v7x-safe
_MIN_SPLIT_BYTES = 2 << 20        # split single/low-block cases above this size


def _round_up(a, m):
    return -(-a // m) * m


def _target_tile_bytes():
    # v5e/v6e have 128 MiB VMEM -> slightly larger tiles amortize the ~0.35us
    # per-grid-step overhead a touch more; v7x (64 MiB VMEM) stays at 4 MiB.
    try:
        info = pltpu.get_tpu_info()
        vmem = getattr(info, "vmem_capacity_bytes", 0) or 0
        if vmem >= 100 * 1024 * 1024:
            return 6 << 20
    except Exception:
        pass
    return _DEFAULT_TILE_BYTES


def _choose_tile_rows(rows, lane, itemsize, sublane_mult, target_tile_bytes):
    """Pick block rows: ~target_tile_bytes blocks, dtype-aware sublane rounding,
    and >= 4 (preferably even) blocks for medium tensors so both v7x
    TensorCores get >= 2 pipelined blocks each."""
    slab_bytes = rows * lane * itemsize
    tile_rows = max(
        sublane_mult,
        (target_tile_bytes // (lane * itemsize)) // sublane_mult * sublane_mult,
    )
    tile_rows = min(tile_rows, rows)
    n_blocks = -(-rows // tile_rows)
    if n_blocks >= 4:
        return tile_rows                       # large tensor: plenty of blocks
    if slab_bytes < _MIN_SPLIT_BYTES or rows < 4 * sublane_mult:
        return rows                            # tiny: one full-array block
    # Medium tensor (would otherwise be 1-3 blocks): largest sublane-aligned
    # tile that gives an even block count >= 4.
    start = max(sublane_mult, _round_up(-(-rows // 4), sublane_mult))
    cand = start
    while cand >= sublane_mult:
        nb = -(-rows // cand)
        if nb >= 4 and nb % 2 == 0:
            return cand
        cand -= sublane_mult
    return start                               # best effort: >= ~4 blocks


def silu_pallas(x):
    """Elementwise SiLU on an array of any shape (NCHW expected)."""
    orig_shape = x.shape
    dtype = x.dtype
    n = x.size
    itemsize = jnp.dtype(dtype).itemsize
    # Sub-32-bit dtypes pack along sublanes: keep tiles sublane-dense.
    sublane_mult = max(8, 32 // itemsize)

    if n < 128:
        # Tiny tensor: a kernel launch is pure overhead.
        return _silu_jnp(x)

    # ---- choose a lane-dense 2D view; no pad copies -------------------------
    flat = jnp.ravel(x)
    lane = next((c for c in _LANE_CANDIDATES if n % c == 0), None)
    tail = None
    if lane is None:
        # Ragged size (rare for NCHW activations): run the kernel on the
        # 128-aligned prefix; the <128-element tail goes through plain jnp.
        lane = 128
        main_n = (n // lane) * lane
        tail = flat[main_n:]
        flat = flat[:main_n]
    else:
        main_n = n

    rows = main_n // lane
    slab = jnp.reshape(flat, (rows, lane))

    tile_rows = _choose_tile_rows(rows, lane, itemsize, sublane_mult,
                                  _target_tile_bytes())
    n_blocks = pl.cdiv(rows, tile_rows)   # partial last block is masked

    out = pl.pallas_call(
        _silu_kernel,
        out_shape=jax.ShapeDtypeStruct((rows, lane), dtype),
        grid_spec=pltpu.PrefetchScalarGridSpec(
            num_scalar_prefetch=0,
            grid=(n_blocks,),
            in_specs=[pl.BlockSpec((tile_rows, lane), lambda i: (i, 0))],
            out_specs=pl.BlockSpec((tile_rows, lane), lambda i: (i, 0)),
        ),
        compiler_params=pltpu.CompilerParams(
            dimension_semantics=("parallel",),
            vmem_limit_bytes=32 * 1024 * 1024,
        ),
        cost_estimate=pl.CostEstimate(
            flops=5 * main_n,
            transcendentals=main_n,
            bytes_accessed=2 * main_n * itemsize,
        ),
        # NOTE: input_output_aliases={0: 0} would reuse x's HBM buffer, but it
        # requires the caller to donate x; left off so x stays usable.
    )(slab)

    if tail is not None:
        out_flat = jnp.concatenate([jnp.ravel(out), _silu_jnp(tail)])
        return jnp.reshape(out_flat, orig_shape)
    return jnp.reshape(out, orig_shape)


def _silu_ref(x):
    xf = x.astype(jnp.float32)
    return (xf * (1.0 / (1.0 + jnp.exp(-xf)))).astype(x.dtype)


if __name__ == "__main__":
    key = jax.random.PRNGKey(0)
    k1, k2, k3, k4 = jax.random.split(key, 4)

    # Primary small NCHW input, matching the PyTorch convention.
    x = jax.random.normal(k1, (2, 4, 16, 16), dtype=jnp.float32)
    y = silu_pallas(x)
    jax.block_until_ready(y)
    assert y.shape == x.shape and y.dtype == x.dtype
    assert jnp.allclose(y, _silu_ref(x), atol=1e-5, rtol=1e-5)

    # Larger case: exercises the multi-block (>=4 even blocks, megacore) path.
    x2 = jax.random.normal(k2, (2, 128, 64, 64), dtype=jnp.float32)
    y2 = silu_pallas(x2)
    jax.block_until_ready(y2)
    assert jnp.allclose(y2, _silu_ref(x2), atol=1e-5, rtol=1e-5)

    # bf16 case: exercises dtype-aware sublane rounding (16-row tiles).
    x3 = jax.random.normal(k3, (2, 128, 64, 64), dtype=jnp.bfloat16)
    y3 = silu_pallas(x3)
    jax.block_until_ready(y3)
    assert y3.dtype == jnp.bfloat16
    assert jnp.allclose(y3.astype(jnp.float32),
                        _silu_ref(x3).astype(jnp.float32),
                        atol=2e-2, rtol=2e-2)

    # Ragged size: exercises the prefix-kernel + jnp-tail path.
    x4 = jax.random.normal(k4, (3, 5, 7, 9), dtype=jnp.float32)
    y4 = silu_pallas(x4)
    jax.block_until_ready(y4)
    assert jnp.allclose(y4, _silu_ref(x4), atol=1e-5, rtol=1e-5)

    print("KERNEL_OK")
</pallas_src>

<mosaic_0001>
module attributes {stable_mosaic.version = 11 : i64} {
  func.func @_silu_kernel(%arg0: i32, %arg1: memref<2x1024xf32, #tpu.memory_space<vmem>>, %arg2: memref<2x1024xf32, #tpu.memory_space<vmem>>) attributes {dimension_semantics = [#tpu.dimension_semantics<parallel>], iteration_bounds = array<i64: 1>, scalar_prefetch = 0 : i64, scratch_operands = 0 : i64, tpu.core_type = #tpu.core_type<tc>, window_params = [{transform_indices = @transform_0, window_bounds = array<i64: 2, 1024>}, {transform_indices = @transform_1, window_bounds = array<i64: 2, 1024>}]} {
    %c0 = arith.constant 0 : index
    %c0_0 = arith.constant 0 : index
    %0 = vector.load %arg1[%c0, %c0_0] : memref<2x1024xf32, #tpu.memory_space<vmem>>, vector<2x1024xf32>
    %cst = arith.constant 0.000000e+00 : f32
    %1 = vector.broadcast %cst : f32 to vector<2x1024xf32>
    %2 = arith.subf %1, %0 : vector<2x1024xf32>
    %3 = math.exp %2 : vector<2x1024xf32>
    %cst_1 = arith.constant 1.000000e+00 : f32
    %4 = vector.broadcast %cst_1 : f32 to vector<2x1024xf32>
    %5 = arith.addf %4, %3 : vector<2x1024xf32>
    %6 = tpu.reciprocal %5 : vector<2x1024xf32> -> vector<2x1024xf32>
    %7 = arith.mulf %0, %6 : vector<2x1024xf32>
    %c0_2 = arith.constant 0 : index
    %c0_3 = arith.constant 0 : index
    %8 = vector.load %arg2[%c0_2, %c0_3] : memref<2x1024xf32, #tpu.memory_space<vmem>>, vector<2x1024xf32>
    tpu.vector_store %arg2[%c0_2, %c0_3], %7 {strides = array<i32>} : memref<2x1024xf32, #tpu.memory_space<vmem>>, vector<2x1024xf32>,
    return
  }
  func.func @transform_0(%arg0: i32) -> (i32, i32) {
    %c0_i32 = arith.constant 0 : i32
    %c0_i32_0 = arith.constant 0 : i32
    return %arg0, %c0_i32 : i32, i32
  }
  func.func @transform_1(%arg0: i32) -> (i32, i32) {
    %c0_i32 = arith.constant 0 : i32
    %c0_i32_0 = arith.constant 0 : i32
    return %arg0, %c0_i32 : i32, i32
  }
}

</mosaic_0001>

<llo_original>
// kernel: tpu_custom_call.1
$region0: #{tpu_custom_call.1}
  #allocation0 [shape = 'u32[]', space=smem, size = 0x4, offset = 0x4, fixed_abs, tag = 'smem constant byte address 0x4 - core index']
  #allocation1 [shape = 'u32[144,128]{1,0:T(1,128)}', space=vmem, size = 0x12000, scoped, tag = 'internal scratch']
  %s0 = inlined_call_operand.hbm [shape: f32[2,1024], index: 0, kind: input, shape index: {}]
  %s1 = inlined_call_operand.hbm [shape: f32[2,1024], index: 1, kind: output, shape index: {}]
  %s2 = sld [smem:[#allocation0]]
  $region18: #{tpu_custom_call.1} parent=0
    _
  %s4 = ssub.s32 1, %s2
  %s5 = scalar_select 0, %s4, %s2
  $region1: #{tpu_custom_call.1} parent=0
    #allocation2 [shape = 'u8[8192]{0}', space=vmem, size = 0x2000, scoped, tag = 'input window, operand 0, single buffered']
    #allocation3 [shape = 's32[1]{0}', space=sflag, size = 0x4, scoped, tag = 'scoped memory for tpu_custom_call.1']
    #allocation4 [shape = 's32[1]{0}', space=sflag, size = 0x4, scoped, tag = 'scoped memory for tpu_custom_call.1']
    #allocation5 [shape = 'u8[8192]{0}', space=vmem, size = 0x2000, scoped, tag = 'output window, operand 0, single buffered']
    %6 = vsyncpa [#allocation3], 0
    %7 = vsyncpa [#allocation4], 0
    // Predicated region
    $region2: #{tpu_custom_call.1} parent=1 // pred_check
      _
    $region3: #{tpu_custom_call.1} parent=1 // pred_check_branch
      %9 = sbr.rel (0) target = $region5
    $region4: #{tpu_custom_call.1} parent=1 // pred_region
      %s11 = ssub.s32 256, 256
      %12 = vsyncadd [#allocation3], %s11
      %s14 = sshll.u32 [#allocation2], 4
      %s15 = int_to_ptr.vmem [resolvable:$true] %s14
      %17 = dma.hbm_to_vmem [thread:$0]  %s0, 256, %s15, [#allocation3]
    $region5: #{tpu_custom_call.1} parent=1 // pred_fallthru
      _
    // Predicated region
    $region6: #{tpu_custom_call.1} parent=1 // pred_check
      _
    $region7: #{tpu_custom_call.1} parent=1 // pred_check_branch
      %19 = sbr.rel (0) target = $region9
    $region8: #{tpu_custom_call.1} parent=1 // pred_region
      %20 = dma.done [#allocation3], 256
    $region9: #{tpu_custom_call.1} parent=1 // pred_fallthru
      _
    %v21 = vld [vmem:[#allocation2] sm:$0xff]
    %v22 = vld [vmem:[#allocation2 + $0x8] sm:$0xff]
    %v23 = vsub.f32 0.0, %v21
    %v24 = vsub.f32 0.0, %v22
    %v25 = vmul.f32 %v23, 1.442695
    %v26 = vpow.pop %v25
    %v27 = vmul.f32 %v24, 1.442695
    %v28 = vpow.pop %v27
    %v29 = vadd.f32 %v26, 1.0
    %v30 = vadd.f32 %v28, 1.0
    %v31 = vrcp.pop %v29
    %v32 = vrcp.pop %v30
    %v33 = vmul.f32 %v21, %v31
    %v34 = vmul.f32 %v22, %v32
    %35 = vst [vmem:[#allocation5] sm:$0xff] %v33
    %36 = vst [vmem:[#allocation5 + $0x8] sm:$0xff] %v34
    // Predicated region
    $region10: #{tpu_custom_call.1} parent=1 // pred_check
      _
    $region11: #{tpu_custom_call.1} parent=1 // pred_check_branch
      %38 = sbr.rel (0) target = $region13
    $region12: #{tpu_custom_call.1} parent=1 // pred_region
      %s40 = ssub.s32 256, 256
      %41 = vsyncadd [#allocation4], %s40
      %s43 = sshll.u32 [#allocation5], 4
      %s44 = int_to_ptr.vmem [resolvable:$true] %s43
      %46 = dma.vmem_to_hbm [thread:$0]  %s44, 256, %s1, [#allocation4]
    $region13: #{tpu_custom_call.1} parent=1 // pred_fallthru
      _
    // Predicated region
    $region14: #{tpu_custom_call.1} parent=1 // pred_check
      _
    $region15: #{tpu_custom_call.1} parent=1 // pred_check_branch
      %48 = sbr.rel (0) target = $region17
    $region16: #{tpu_custom_call.1} parent=1 // pred_region
      %49 = dma.done [#allocation4], 256
    $region17: #{tpu_custom_call.1} parent=1 // pred_fallthru
      _
    %50 = vsyncpa [#allocation3], 1
    %51 = vsyncpa [#allocation4], 1

</llo_original>
